<compile_context>
chip_gen: v7x
topology: tpu7x:2x2x1
jax: 0.10.0
libtpu: 0.0.40
codegen_flags: <defaults>
</compile_context>

<pallas_src>
import jax
import jax.numpy as jnp
from jax.experimental import pallas as pl
from jax.experimental.pallas import tpu as pltpu

LANE = 128     # channel-like axes are padded to a multiple of this
TM = 512       # row tile over the (N*H*W) axis
BN_EPS = 1e-5


# ------------------------------ small helpers ------------------------------

def _round_up(x, m):
    return ((x + m - 1) // m) * m


def _pad_last(x, target):
    pad = target - x.shape[-1]
    if pad == 0:
        return x
    return jnp.pad(x, [(0, 0)] * (x.ndim - 1) + [(0, pad)])


def _pad_rows(x, tm):
    mp = _round_up(x.shape[0], tm)
    if mp == x.shape[0]:
        return x
    return jnp.pad(x, ((0, mp - x.shape[0]), (0, 0)))


def _choose_tm(m, tm):
    # tile must be a multiple of 8 sublanes; keep one big tile for small M.
    return min(tm, _round_up(m, 8))


# ----------------------------- Pallas kernels ------------------------------

def _matmul_bias_kernel(a_ref, b_ref, bias_ref, o_ref):
    acc = jnp.dot(a_ref[...], b_ref[...], preferred_element_type=jnp.float32)
    o_ref[...] = (acc + bias_ref[...]).astype(o_ref.dtype)


def _matmul_stats_kernel(a_ref, b_ref, o_ref, sum_ref, sq_ref):
    """y = a @ b plus fused per-lane sum / sum-of-squares (for BatchNorm)."""
    @pl.when(pl.program_id(0) == 0)
    def _init():
        sum_ref[...] = jnp.zeros_like(sum_ref)
        sq_ref[...] = jnp.zeros_like(sq_ref)

    y = jnp.dot(a_ref[...], b_ref[...], preferred_element_type=jnp.float32)
    o_ref[...] = y
    sum_ref[...] += jnp.sum(y, axis=0, keepdims=True)
    sq_ref[...] += jnp.sum(y * y, axis=0, keepdims=True)


def _affine_relu_kernel(x_ref, s_ref, b_ref, o_ref):
    y = jnp.maximum(x_ref[...] * s_ref[...] + b_ref[...], 0.0)
    o_ref[...] = y.astype(o_ref.dtype)


def _dual_affine_add_relu_kernel(x_ref, y_ref, sx_ref, bx_ref, sy_ref, by_ref,
                                 o_ref):
    z = (x_ref[...] * sx_ref[...] + bx_ref[...]
         + y_ref[...] * sy_ref[...] + by_ref[...])
    o_ref[...] = jnp.maximum(z, 0.0).astype(o_ref.dtype)


# ------------------------------ kernel wrappers -----------------------------

def pallas_matmul_bias(a, b, bias, out_dtype=jnp.bfloat16, tm=TM):
    """out = a @ b + bias (row-tiled).  a:(M,K) bf16, b:(K,N) bf16, bias:(1,N) f32."""
    m0, k = a.shape
    n = b.shape[1]
    tm = _choose_tm(m0, tm)
    a = _pad_rows(a, tm)
    mp = a.shape[0]
    out = pl.pallas_call(
        _matmul_bias_kernel,
        out_shape=jax.ShapeDtypeStruct((mp, n), out_dtype),
        grid=(mp // tm,),
        in_specs=[
            pl.BlockSpec((tm, k), lambda i: (i, 0)),
            pl.BlockSpec((k, n), lambda i: (0, 0)),
            pl.BlockSpec((1, n), lambda i: (0, 0)),
        ],
        out_specs=pl.BlockSpec((tm, n), lambda i: (i, 0)),
        compiler_params=pltpu.CompilerParams(dimension_semantics=("parallel",)),
    )(a, b, bias)
    return out[:m0]


def pallas_matmul_stats(a, b, tm=TM):
    """y = a @ b (bias-free conv) with fused BatchNorm batch statistics.

    Zero-padded rows of `a` produce zero output rows and therefore do not
    perturb the sums; the mean/var divide by the true row count m0.
    """
    m0, k = a.shape
    n = b.shape[1]
    tm = _choose_tm(m0, tm)
    a = _pad_rows(a, tm)
    mp = a.shape[0]
    y, s, sq = pl.pallas_call(
        _matmul_stats_kernel,
        out_shape=(
            jax.ShapeDtypeStruct((mp, n), jnp.float32),
            jax.ShapeDtypeStruct((1, n), jnp.float32),
            jax.ShapeDtypeStruct((1, n), jnp.float32),
        ),
        grid=(mp // tm,),
        in_specs=[
            pl.BlockSpec((tm, k), lambda i: (i, 0)),
            pl.BlockSpec((k, n), lambda i: (0, 0)),
        ],
        out_specs=(
            pl.BlockSpec((tm, n), lambda i: (i, 0)),
            pl.BlockSpec((1, n), lambda i: (0, 0)),   # resident accumulator
            pl.BlockSpec((1, n), lambda i: (0, 0)),   # resident accumulator
        ),
        compiler_params=pltpu.CompilerParams(dimension_semantics=("arbitrary",)),
    )(a, b)
    mean = s / m0
    var = jnp.maximum(sq / m0 - mean * mean, 0.0)   # biased var, clamped >= 0
    return y[:m0], mean, var


def pallas_affine_relu(x, scale, bias, out_dtype=jnp.bfloat16, tm=TM):
    """y = relu(x * scale + bias), per-lane scale/bias (folded BatchNorm)."""
    m0, n = x.shape
    tm = _choose_tm(m0, tm)
    x = _pad_rows(x, tm)
    mp = x.shape[0]
    out = pl.pallas_call(
        _affine_relu_kernel,
        out_shape=jax.ShapeDtypeStruct((mp, n), out_dtype),
        grid=(mp // tm,),
        in_specs=[
            pl.BlockSpec((tm, n), lambda i: (i, 0)),
            pl.BlockSpec((1, n), lambda i: (0, 0)),
            pl.BlockSpec((1, n), lambda i: (0, 0)),
        ],
        out_specs=pl.BlockSpec((tm, n), lambda i: (i, 0)),
        compiler_params=pltpu.CompilerParams(dimension_semantics=("parallel",)),
    )(x, scale, bias)
    return out[:m0]


def pallas_dual_affine_add_relu(x, y, sx, bx, sy, by, tm=TM):
    """out = relu(x*sx + bx + y*sy + by) -- fused BN(res) + BN(shortcut) + ReLU."""
    m0, n = x.shape
    tm = _choose_tm(m0, tm)
    x = _pad_rows(x, tm)
    y = _pad_rows(y, tm)
    mp = x.shape[0]
    row = pl.BlockSpec((tm, n), lambda i: (i, 0))
    vec = pl.BlockSpec((1, n), lambda i: (0, 0))
    out = pl.pallas_call(
        _dual_affine_add_relu_kernel,
        out_shape=jax.ShapeDtypeStruct((mp, n), jnp.float32),
        grid=(mp // tm,),
        in_specs=[row, row, vec, vec, vec, vec],
        out_specs=row,
        compiler_params=pltpu.CompilerParams(dimension_semantics=("parallel",)),
    )(x, y, sx, bx, sy, by)
    return out[:m0]


# --------------------------------- JAX glue ---------------------------------

def im2col_3x3(x_nhwc):
    """3x3 / stride 1 / pad 1 patch extraction -> (N*H*W, 9*C); order (ky,kx,c)."""
    n, h, w, c = x_nhwc.shape
    xp = jnp.pad(x_nhwc, ((0, 0), (1, 1), (1, 1), (0, 0)))
    cols = [xp[:, ky:ky + h, kx:kx + w, :] for ky in range(3) for kx in range(3)]
    return jnp.stack(cols, axis=3).reshape(n * h * w, 9 * c)
    # TODO(synk): stream the im2col inside the matmul kernel (halo'd row tiles)
    # to avoid the 9x HBM blow-up at production channel counts.


def conv3x3_w_to_mat(w):
    """PyTorch (Cout, Cin, 3, 3) -> (9*Cin, Cout), matching im2col_3x3 order."""
    cout, cin = w.shape[0], w.shape[1]
    return jnp.transpose(w, (2, 3, 1, 0)).reshape(9 * cin, cout)


def bn_fold(mean, var, gamma, beta, eps=BN_EPS):
    scale = gamma / jnp.sqrt(var + eps)
    bias = beta - mean * scale
    return scale, bias


def _lane_embed(vec, start, width=LANE):
    """Place a per-channel vector into lanes [start, start+len) of a (1, width) row."""
    out = jnp.zeros((1, width), jnp.float32)
    return out.at[0, start:start + vec.shape[0]].set(vec)


def unet_up_block_forward(p, x, bridge):
    """x: (N, in_chans, Hi, Wi) NCHW; bridge: (N, bridge_chans, Hb, Wb) NCHW."""
    n, cin, hi, wi = x.shape
    cout = p["up_w"].shape[1]
    c1 = cout          # conv1 / conv2 output channels
    csc = cout         # 1x1 shortcut output channels

    # ---- self.up = ConvTranspose2d(in_chans, out_chans, k=2, s=2) ----
    # out[n, o, 2i+di, 2j+dj] = sum_c x[n,c,i,j] * W[c,o,di,dj] + b[o]
    x_flat = (jnp.transpose(x, (0, 2, 3, 1))
              .reshape(n * hi * wi, cin).astype(jnp.bfloat16))
    kup = 4 * cout
    np_up = _round_up(kup, LANE)
    w_up = jnp.transpose(p["up_w"], (0, 2, 3, 1)).reshape(cin, kup)  # (c,(di,dj,o))
    w_up = _pad_last(w_up, np_up).astype(jnp.bfloat16)
    b_up = _pad_last(jnp.tile(p["up_b"], 4).reshape(1, kup), np_up).astype(jnp.float32)
    up_flat = pallas_matmul_bias(x_flat, w_up, b_up, out_dtype=jnp.bfloat16)
    up = up_flat[:, :kup].reshape(n, hi, wi, 2, 2, cout)
    up = jnp.transpose(up, (0, 1, 3, 2, 4, 5)).reshape(n, 2 * hi, 2 * wi, cout)
    ho, wo = 2 * hi, 2 * wi
    m = n * ho * wo
    # TODO(synk): fold this depth-to-space + the NCHW<->NHWC transposes into the
    # pallas_call out_spec index_map to remove the remaining XLA copy passes.

    # ---- center_crop(bridge, up.shape[2:]) and channel concat ----
    br = jnp.transpose(bridge, (0, 2, 3, 1)).astype(jnp.bfloat16)
    hb, wb, cb = br.shape[1], br.shape[2], br.shape[3]
    dy, dx = (hb - ho) // 2, (wb - wo) // 2
    crop = br[:, dy:dy + ho, dx:dx + wo, :]
    cat = jnp.concatenate([crop, up], axis=-1)            # (n, ho, wo, cb+cout)
    ccat = cb + cout

    # ---- BasicBlock: conv1 (3x3) + 1x1 shortcut fused into ONE matmul ----
    # The 1x1 shortcut only needs the center-tap (k == 4) rows of im2col(cat),
    # so its weights live in the same slab.  Output lanes:
    #   [0, csc)        -> shortcut pre-BN
    #   [csc, csc+c1)   -> conv1 pre-BN
    # BN stats for both are accumulated inside the same kernel.
    k1 = 9 * ccat
    kp1 = _round_up(k1, LANE)
    a1 = _pad_last(im2col_3x3(cat), kp1)                  # (m, kp1) bf16
    w1 = conv3x3_w_to_mat(p["c1_w"])                      # (9*ccat, c1)
    wsc = p["sc_w"][:, :, 0, 0].T                         # (ccat, csc)
    w_comb = jnp.zeros((kp1, LANE), jnp.float32)
    w_comb = w_comb.at[4 * ccat:5 * ccat, 0:csc].set(wsc)
    w_comb = w_comb.at[0:k1, csc:csc + c1].set(w1)
    r1sc, mean_a, var_a = pallas_matmul_stats(a1, w_comb.astype(jnp.bfloat16))

    s_sc, b_sc = bn_fold(mean_a, var_a,
                         _lane_embed(p["bnsc_g"], 0), _lane_embed(p["bnsc_b"], 0))
    s_1, b_1 = bn_fold(mean_a, var_a,
                       _lane_embed(p["bn1_g"], csc), _lane_embed(p["bn1_b"], csc))

    # ---- ReLU(BN1(conv1)) -> conv2 (3x3) with fused stats ----
    act1 = pallas_affine_relu(r1sc, s_1, b_1, out_dtype=jnp.bfloat16)
    act1_img = act1[:, csc:csc + c1].reshape(n, ho, wo, c1)
    k2 = 9 * c1
    kp2 = _round_up(k2, LANE)
    a2 = _pad_last(im2col_3x3(act1_img), kp2)             # (m, kp2) bf16
    w2 = jnp.zeros((kp2, LANE), jnp.float32)
    w2 = w2.at[0:k2, 0:c1].set(conv3x3_w_to_mat(p["c2_w"]))
    r2, mean_2, var_2 = pallas_matmul_stats(a2, w2.astype(jnp.bfloat16))
    s_2, b_2 = bn_fold(mean_2, var_2,
                       _lane_embed(p["bn2_g"], 0), _lane_embed(p["bn2_b"], 0))

    # ---- relu( BN2(conv2) + BNsc(shortcut) ), fused & lane-aligned ----
    # conv2 lives in lanes [0,c1) of r2; the shortcut in lanes [0,csc) of r1sc.
    out_flat = pallas_dual_affine_add_relu(r2, r1sc, s_2, b_2, s_sc, b_sc)
    out = out_flat[:, :cout].reshape(n, ho, wo, cout)
    return jnp.transpose(out, (0, 3, 1, 2))               # back to NCHW


# ----------------------------------- main ------------------------------------

if __name__ == "__main__":
    key = jax.random.PRNGKey(0)
    keys = jax.random.split(key, 8)

    N = 2
    in_chans, bridge_chans, out_chans = 4, 4, 8
    Hi = Wi = 8          # x spatial; up-sampled to 16x16
    Hb = Wb = 18         # bridge is larger -> center_crop actually crops
    cat_chans = out_chans + bridge_chans

    x = jax.random.normal(keys[0], (N, in_chans, Hi, Wi), jnp.float32)
    bridge = jax.random.normal(keys[1], (N, bridge_chans, Hb, Wb), jnp.float32)

    params = {
        # ConvTranspose2d(in_chans, out_chans, k=2, s=2): weight (Cin, Cout, 2, 2)
        "up_w": 0.1 * jax.random.normal(keys[2], (in_chans, out_chans, 2, 2), jnp.float32),
        "up_b": 0.1 * jax.random.normal(keys[3], (out_chans,), jnp.float32),
        # BasicBlock residual branch
        "c1_w": 0.1 * jax.random.normal(keys[4], (out_chans, cat_chans, 3, 3), jnp.float32),
        "bn1_g": jnp.ones((out_chans,), jnp.float32),
        "bn1_b": jnp.zeros((out_chans,), jnp.float32),
        "c2_w": 0.1 * jax.random.normal(keys[5], (out_chans, out_chans, 3, 3), jnp.float32),
        "bn2_g": jnp.ones((out_chans,), jnp.float32),
        "bn2_b": jnp.zeros((out_chans,), jnp.float32),
        # BasicBlock shortcut (1x1 conv + BN)
        "sc_w": 0.1 * jax.random.normal(keys[6], (out_chans, cat_chans, 1, 1), jnp.float32),
        "bnsc_g": jnp.ones((out_chans,), jnp.float32),
        "bnsc_b": jnp.zeros((out_chans,), jnp.float32),
    }

    out = unet_up_block_forward(params, x, bridge)
    out = jax.block_until_ready(out)
    assert out.shape == (N, out_chans, 2 * Hi, 2 * Wi), out.shape
    assert bool(jnp.all(jnp.isfinite(out)))
    print("KERNEL_OK")
</pallas_src>

<mosaic_0001>
module attributes {stable_mosaic.version = 11 : i64} {
  func.func @_matmul_bias_kernel(%arg0: i32, %arg1: memref<128x4xbf16, #tpu.memory_space<vmem>>, %arg2: memref<4x128xbf16, #tpu.memory_space<vmem>>, %arg3: memref<1x128xf32, #tpu.memory_space<vmem>>, %arg4: memref<128x128xbf16, #tpu.memory_space<vmem>>) attributes {dimension_semantics = [#tpu.dimension_semantics<parallel>], iteration_bounds = array<i64: 1>, scalar_prefetch = 0 : i64, scratch_operands = 0 : i64, tpu.core_type = #tpu.core_type<tc>, window_params = [{transform_indices = @transform_0, window_bounds = array<i64: 128, 4>}, {pipeline_mode = #tpu.pipeline_mode<synchronous>, transform_indices = @transform_1, window_bounds = array<i64: 4, 128>}, {pipeline_mode = #tpu.pipeline_mode<synchronous>, transform_indices = @transform_2, window_bounds = array<i64: 1, 128>}, {transform_indices = @transform_3, window_bounds = array<i64: 128, 128>}]} {
    %c0 = arith.constant 0 : index
    %c0_0 = arith.constant 0 : index
    %0 = vector.load %arg1[%c0, %c0_0] : memref<128x4xbf16, #tpu.memory_space<vmem>>, vector<128x4xbf16>
    %c0_1 = arith.constant 0 : index
    %c0_2 = arith.constant 0 : index
    %1 = vector.load %arg2[%c0_1, %c0_2] : memref<4x128xbf16, #tpu.memory_space<vmem>>, vector<4x128xbf16>
    %cst = arith.constant dense<0.000000e+00> : vector<128x128xf32>
    %2 = tpu.matmul %0, %1, %cst {dimension_numbers = #tpu.dot_dimension_numbers<[1], [0], [0], [1], [0, 0, 1, 1], [], []>} : vector<128x4xbf16>, vector<4x128xbf16>, vector<128x128xf32> -> vector<128x128xf32>
    %c0_3 = arith.constant 0 : index
    %c0_4 = arith.constant 0 : index
    %3 = vector.load %arg3[%c0_3, %c0_4] : memref<1x128xf32, #tpu.memory_space<vmem>>, vector<1x128xf32>
    %4 = vector.broadcast %3 : vector<1x128xf32> to vector<128x128xf32>
    %5 = arith.addf %2, %4 : vector<128x128xf32>
    %6 = arith.truncf %5 : vector<128x128xf32> to vector<128x128xbf16>
    %c0_5 = arith.constant 0 : index
    %c0_6 = arith.constant 0 : index
    %7 = vector.load %arg4[%c0_5, %c0_6] : memref<128x128xbf16, #tpu.memory_space<vmem>>, vector<128x128xbf16>
    tpu.vector_store %arg4[%c0_5, %c0_6], %6 {strides = array<i32>} : memref<128x128xbf16, #tpu.memory_space<vmem>>, vector<128x128xbf16>,
    return
  }
  func.func @transform_0(%arg0: i32) -> (i32, i32) {
    %c0_i32 = arith.constant 0 : i32
    %c0_i32_0 = arith.constant 0 : i32
    return %arg0, %c0_i32 : i32, i32
  }
  func.func @transform_1(%arg0: i32) -> (i32, i32) {
    %c0_i32 = arith.constant 0 : i32
    %c0_i32_0 = arith.constant 0 : i32
    %c0_i32_1 = arith.constant 0 : i32
    return %c0_i32, %c0_i32_0 : i32, i32
  }
  func.func @transform_2(%arg0: i32) -> (i32, i32) {
    %c0_i32 = arith.constant 0 : i32
    %c0_i32_0 = arith.constant 0 : i32
    %c0_i32_1 = arith.constant 0 : i32
    return %c0_i32, %c0_i32_0 : i32, i32
  }
  func.func @transform_3(%arg0: i32) -> (i32, i32) {
    %c0_i32 = arith.constant 0 : i32
    %c0_i32_0 = arith.constant 0 : i32
    return %arg0, %c0_i32 : i32, i32
  }
}

</mosaic_0001>

<llo_original>
// kernel: tpu_custom_call.1
$region0: #{tpu_custom_call.1}
  #allocation0 [shape = 'u32[]', space=smem, size = 0x4, offset = 0x4, fixed_abs, tag = 'smem constant byte address 0x4 - core index']
  #allocation1 [shape = 'u32[144,128]{1,0:T(1,128)}', space=vmem, size = 0x12000, scoped, tag = 'internal scratch']
  %s0 = inlined_call_operand.vmem [shape: bf16[128,4], index: 0, kind: input, shape index: {}]
  %s1 = inlined_call_operand.vmem [shape: bf16[4,128], index: 1, kind: input, shape index: {}]
  %s2 = inlined_call_operand.vmem [shape: f32[1,128], index: 2, kind: input, shape index: {}]
  %s3 = inlined_call_operand.hbm [shape: bf16[128,128], index: 3, kind: output, shape index: {}]
  %s4 = sld [smem:[#allocation0]]
  $region22: #{tpu_custom_call.1} parent=0
    _
  %s6 = ssub.s32 1, %s4
  %s7 = scalar_select 0, %s6, %s4
  $region1: #{tpu_custom_call.1} parent=0
    #allocation2 [shape = 'u8[32768]{0}', space=vmem, size = 0x8000, scoped, tag = 'output window, operand 0, single buffered']
    #allocation3 [shape = 's32[1]{0}', space=sflag, size = 0x4, scoped, tag = 'scoped memory for tpu_custom_call.1']
    %8 = vsyncpa [#allocation3], 0
    // Predicated region
    $region2: #{tpu_custom_call.1} parent=1 // pred_check
      _
    $region3: #{tpu_custom_call.1} parent=1 // pred_check_branch
      %10 = sbr.rel (0) target = $region5
    $region4: #{tpu_custom_call.1} parent=1 // pred_region
      _
    $region5: #{tpu_custom_call.1} parent=1 // pred_fallthru
      _
    // Predicated region
    $region6: #{tpu_custom_call.1} parent=1 // pred_check
      _
    $region7: #{tpu_custom_call.1} parent=1 // pred_check_branch
      %12 = sbr.rel (0) target = $region9
    $region8: #{tpu_custom_call.1} parent=1 // pred_region
      _
    $region9: #{tpu_custom_call.1} parent=1 // pred_fallthru
      _
    // Predicated region
    $region10: #{tpu_custom_call.1} parent=1 // pred_check
      _
    $region11: #{tpu_custom_call.1} parent=1 // pred_check_branch
      %14 = sbr.rel (0) target = $region13
    $region12: #{tpu_custom_call.1} parent=1 // pred_region
      _
    $region13: #{tpu_custom_call.1} parent=1 // pred_fallthru
      _
    %v16 = vld [vmem:[%s0] sm:$0xf]
    %v17 = vld [vmem:[%s0 + $0x4] sm:$0xf]
    %v18 = vld [vmem:[%s0 + $0x8] sm:$0xf]
    %v19 = vld [vmem:[%s0 + $0xc] sm:$0xf]
    %v20 = vld [vmem:[%s0 + $0x10] sm:$0xf]
    %v21 = vld [vmem:[%s0 + $0x14] sm:$0xf]
    %v22 = vld [vmem:[%s0 + $0x18] sm:$0xf]
    %v23 = vld [vmem:[%s0 + $0x1c] sm:$0xf]
    %v24 = vld [vmem:[%s0 + $0x20] sm:$0xf]
    %v25 = vld [vmem:[%s0 + $0x24] sm:$0xf]
    %v26 = vld [vmem:[%s0 + $0x28] sm:$0xf]
    %v27 = vld [vmem:[%s0 + $0x2c] sm:$0xf]
    %v28 = vld [vmem:[%s0 + $0x30] sm:$0xf]
    %v29 = vld [vmem:[%s0 + $0x34] sm:$0xf]
    %v30 = vld [vmem:[%s0 + $0x38] sm:$0xf]
    %v31 = vld [vmem:[%s0 + $0x3c] sm:$0xf]
    %v32 = vld [vmem:[%s1] sm:$0x3]
    %v33 = vld [vmem:[%s2] sm:$0x1]
    %v35 = vlaneseq
    %v36 = vshrl.u32 %v35, 7
    %v37 = vsub.s32 0, %v36
    %v38 = vrot.slane %v33, %v37
    %v56 = vunpack.c.l.b16 %v16
    %v57 = vunpack.c.l.b16 %v17
    %v58 = vunpack.c.l.b16 %v18
    %v59 = vunpack.c.l.b16 %v19
    %v60 = vunpack.c.l.b16 %v20
    %v61 = vunpack.c.l.b16 %v21
    %v62 = vunpack.c.l.b16 %v22
    %v63 = vunpack.c.l.b16 %v23
    %v64 = vunpack.c.l.b16 %v24
    %v65 = vunpack.c.l.b16 %v25
    %v66 = vunpack.c.l.b16 %v26
    %v67 = vunpack.c.l.b16 %v27
    %v68 = vunpack.c.l.b16 %v28
    %v69 = vunpack.c.l.b16 %v29
    %v70 = vunpack.c.l.b16 %v30
    %v71 = vunpack.c.l.b16 %v31
    %v72 = vpack.c.b16 %v57, %v56
    %v73 = vpack.c.b16 %v59, %v58
    %v74 = vpack.c.b16 %v61, %v60
    %v75 = vpack.c.b16 %v63, %v62
    %v76 = vpack.c.b16 %v65, %v64
    %v77 = vpack.c.b16 %v67, %v66
    %v78 = vpack.c.b16 %v69, %v68
    %v79 = vpack.c.b16 %v71, %v70
    %vm80 = vcmask 31744
    %v82 = vsel %vm80, %v72, 0
    %v85 = vsel %vm80, %v73, 0
    %v88 = vsel %vm80, %v74, 0
    %v91 = vsel %vm80, %v75, 0
    %v94 = vsel %vm80, %v76, 0
    %v97 = vsel %vm80, %v77, 0
    %v100 = vsel %vm80, %v78, 0
    %v103 = vsel %vm80, %v79, 0
    %vm105 = vcmask 1041408
    %v107 = vsel %vm105, %v32, 0
    %109 = vmatprep.subr.bf16.mxu0 0
    %110 = vmatpush1.bf16.msra.mxu0 %v107
    %111 = vmatprep.subr.bf16.mxu0 0
    %112 = vmatpush1.bf16.msra.mxu0 0
    %113 = vmatprep.subr.bf16.mxu0 0
    %114 = vmatpush1.bf16.msra.mxu0 0
    %115 = vmatprep.subr.bf16.mxu0 0
    %116 = vmatpush1.bf16.msra.mxu0 0
    %117 = vmatprep.subr.bf16.mxu0 0
    %118 = vmatpush1.bf16.msra.mxu0 0
    %119 = vmatprep.subr.bf16.mxu0 0
    %120 = vmatpush1.bf16.msra.mxu0 0
    %121 = vmatprep.subr.bf16.mxu0 0
    %122 = vmatpush1.bf16.msra.mxu0 0
    %123 = vmatprep.subr.bf16.mxu0 0
    %124 = vmatpush1.bf16.msra.mxu0 0
    %125 = vmatprep.subr.bf16.mxu0 0
    %126 = vmatpush1.bf16.msra.mxu0 0
    %127 = vmatprep.subr.bf16.mxu0 0
    %128 = vmatpush1.bf16.msra.mxu0 0
    %129 = vmatprep.subr.bf16.mxu0 0
    %130 = vmatpush1.bf16.msra.mxu0 0
    %131 = vmatprep.subr.bf16.mxu0 0
    %132 = vmatpush1.bf16.msra.mxu0 0
    %133 = vmatprep.subr.bf16.mxu0 0
    %134 = vmatpush1.bf16.msra.mxu0 0
    %135 = vmatprep.subr.bf16.mxu0 0
    %136 = vmatpush1.bf16.msra.mxu0 0
    %137 = vmatprep.subr.bf16.mxu0 0
    %138 = vmatpush1.bf16.msra.mxu0 0
    %139 = vmatprep.subr.bf16.mxu0 0
    %140 = vmatpush1.bf16.msra.mxu0 0
    %141 = vmatprep.mubr.bf16.mxu0 0
    %142 = vmatmul.mubr.bf16.gmra.mrb[0].mxu0 %v82
    %v143 = vpop.f32.mrb[0].mxu0
    %v144 = vadd.f32 %v38, %v143
    %v145 = vpop.f32.mrb[0].mxu0
    %v146 = vpop.f32.mrb[0].mxu0
    %v147 = vadd.f32 %v38, %v146
    %v148 = vpop.f32.mrb[0].mxu0
    %149 = vmatprep.mubr.bf16.mxu0 0
    %150 = vmatmul.mubr.bf16.gmra.mrb[0].mxu0 %v85
    %v151 = vpop.f32.mrb[0].mxu0
    %v152 = vadd.f32 %v38, %v151
    %v153 = vpop.f32.mrb[0].mxu0
    %v154 = vpop.f32.mrb[0].mxu0
    %v155 = vadd.f32 %v38, %v154
    %v156 = vpop.f32.mrb[0].mxu0
    %157 = vmatprep.mubr.bf16.mxu0 0
    %158 = vmatmul.mubr.bf16.gmra.mrb[0].mxu0 %v88
    %v159 = vpop.f32.mrb[0].mxu0
    %v160 = vadd.f32 %v38, %v159
    %v161 = vpop.f32.mrb[0].mxu0
    %v162 = vpop.f32.mrb[0].mxu0
    %v163 = vadd.f32 %v38, %v162
    %v164 = vpop.f32.mrb[0].mxu0
    %165 = vmatprep.mubr.bf16.mxu0 0
    %166 = vmatmul.mubr.bf16.gmra.mrb[0].mxu0 %v91
    %v167 = vpop.f32.mrb[0].mxu0
    %v168 = vadd.f32 %v38, %v167
    %v169 = vpop.f32.mrb[0].mxu0
    %v170 = vpop.f32.mrb[0].mxu0
    %v171 = vadd.f32 %v38, %v170
    %v172 = vpop.f32.mrb[0].mxu0
    %173 = vmatprep.mubr.bf16.mxu0 0
    %174 = vmatmul.mubr.bf16.gmra.mrb[0].mxu0 %v94
    %v175 = vpop.f32.mrb[0].mxu0
    %v176 = vadd.f32 %v38, %v175
    %v177 = vpop.f32.mrb[0].mxu0
    %v178 = vpop.f32.mrb[0].mxu0
    %v179 = vadd.f32 %v38, %v178
    %v180 = vpop.f32.mrb[0].mxu0
    %181 = vmatprep.mubr.bf16.mxu0 0
    %182 = vmatmul.mubr.bf16.gmra.mrb[0].mxu0 %v97
    %v183 = vpop.f32.mrb[0].mxu0
    %v184 = vadd.f32 %v38, %v183
    %v185 = vpop.f32.mrb[0].mxu0
    %v186 = vpop.f32.mrb[0].mxu0
    %v187 = vadd.f32 %v38, %v186
    %v188 = vpop.f32.mrb[0].mxu0
    %189 = vmatprep.mubr.bf16.mxu0 0
    %190 = vmatmul.mubr.bf16.gmra.mrb[0].mxu0 %v100
    %v191 = vpop.f32.mrb[0].mxu0
    %v192 = vadd.f32 %v38, %v191
    %v193 = vpop.f32.mrb[0].mxu0
    %v194 = vpop.f32.mrb[0].mxu0
    %v195 = vadd.f32 %v38, %v194
    %v196 = vpop.f32.mrb[0].mxu0
    %197 = vmatprep.mubr.bf16.mxu0 0
    %198 = vmatmul.mubr.bf16.gmra.mrb[0].mxu0 %v103
    %v199 = vpop.f32.mrb[0].mxu0
    %v200 = vadd.f32 %v38, %v199
    %v201 = vpop.f32.mrb[0].mxu0
    %v202 = vpop.f32.mrb[0].mxu0
    %v203 = vadd.f32 %v38, %v202
    %v204 = vpop.f32.mrb[0].mxu0
    %205 = vdwg.mxu0
    %v206 = vpack.c.bf16 %v147, %v144
    %v207 = vpack.c.bf16 %v155, %v152
    %v208 = vpack.c.bf16 %v163, %v160
    %v209 = vpack.c.bf16 %v171, %v168
    %v210 = vpack.c.bf16 %v179, %v176
    %v211 = vpack.c.bf16 %v187, %v184
    %v212 = vpack.c.bf16 %v195, %v192
    %v213 = vpack.c.bf16 %v203, %v200
    %v222 = vunpack.c.l.b16 %v206
    %v223 = vunpack.c.h.b16 %v206
    %v224 = vunpack.c.l.b16 %v207
    %v225 = vunpack.c.h.b16 %v207
    %v226 = vunpack.c.l.b16 %v208
    %v227 = vunpack.c.h.b16 %v208
    %v228 = vunpack.c.l.b16 %v209
    %v229 = vunpack.c.h.b16 %v209
    %v230 = vunpack.c.l.b16 %v210
    %v231 = vunpack.c.h.b16 %v210
    %v232 = vunpack.c.l.b16 %v211
    %v233 = vunpack.c.h.b16 %v211
    %v234 = vunpack.c.l.b16 %v212
    %v235 = vunpack.c.h.b16 %v212
    %v236 = vunpack.c.l.b16 %v213
    %v237 = vunpack.c.h.b16 %v213
    %v238 = vpack.c.b16 %v222, %v222
    %v239 = vpack.c.b16 %v223, %v223
    %v240 = vpack.c.b16 %v224, %v224
    %v241 = vpack.c.b16 %v225, %v225
    %v242 = vpack.c.b16 %v226, %v226
    %v243 = vpack.c.b16 %v227, %v227
    %v244 = vpack.c.b16 %v228, %v228
    %v245 = vpack.c.b16 %v229, %v229
    %v246 = vpack.c.b16 %v230, %v230
    %v247 = vpack.c.b16 %v231, %v231
    %v248 = vpack.c.b16 %v232, %v232
    %v249 = vpack.c.b16 %v233, %v233
    %v250 = vpack.c.b16 %v234, %v234
    %v251 = vpack.c.b16 %v235, %v235
    %v252 = vpack.c.b16 %v236, %v236
    %v253 = vpack.c.b16 %v237, %v237
    %270 = vst [vmem:[#allocation2] sm:$0xf] %v238
    %271 = vst [vmem:[#allocation2 + $0x4] sm:$0xf] %v239
    %272 = vst [vmem:[#allocation2 + $0x8] sm:$0xf] %v240
    %273 = vst [vmem:[#allocation2 + $0xc] sm:$0xf] %v241
    %274 = vst [vmem:[#allocation2 + $0x10] sm:$0xf] %v242
    %275 = vst [vmem:[#allocation2 + $0x14] sm:$0xf] %v243
    %276 = vst [vmem:[#allocation2 + $0x18] sm:$0xf] %v244
    %277 = vst [vmem:[#allocation2 + $0x1c] sm:$0xf] %v245
    %278 = vst [vmem:[#allocation2 + $0x20] sm:$0xf] %v246
    %279 = vst [vmem:[#allocation2 + $0x24] sm:$0xf] %v247
    %280 = vst [vmem:[#allocation2 + $0x28] sm:$0xf] %v248
    %281 = vst [vmem:[#allocation2 + $0x2c] sm:$0xf] %v249
    %282 = vst [vmem:[#allocation2 + $0x30] sm:$0xf] %v250
    %283 = vst [vmem:[#allocation2 + $0x34] sm:$0xf] %v251
    %284 = vst [vmem:[#allocation2 + $0x38] sm:$0xf] %v252
    %285 = vst [vmem:[#allocation2 + $0x3c] sm:$0xf] %v253
    // Predicated region
    $region14: #{tpu_custom_call.1} parent=1 // pred_check
      _
    $region15: #{tpu_custom_call.1} parent=1 // pred_check_branch
      %287 = sbr.rel (0) target = $region17
    $region16: #{tpu_custom_call.1} parent=1 // pred_region
      %s289 = ssub.s32 1024, 1024
      %290 = vsyncadd [#allocation3], %s289
      %s291 = sshll.u32 [#allocation2], 4
      %s292 = int_to_ptr.vmem [resolvable:$true] %s291
      %297 = dma.vmem_to_hbm [thread:$0]  %s292, 1024, %s3, [#allocation3], 64, 64, 4
    $region17: #{tpu_custom_call.1} parent=1 // pred_fallthru
      _
    // Predicated region
    $region18: #{tpu_custom_call.1} parent=1 // pred_check
      _
    $region19: #{tpu_custom_call.1} parent=1 // pred_check_branch
      %299 = sbr.rel (0) target = $region21
    $region20: #{tpu_custom_call.1} parent=1 // pred_region
      %300 = dma.done [#allocation3], 1024
    $region21: #{tpu_custom_call.1} parent=1 // pred_fallthru
      _
    %301 = vsyncpa [#allocation3], 1

</llo_original>
